<compile_context>
chip_gen: v7x
topology: tpu7x:2x2x1
jax: 0.10.0
libtpu: 0.0.40
codegen_flags: <defaults>
</compile_context>

<pallas_src>
import jax
import jax.numpy as jnp
from jax.experimental import pallas as pl
from jax.experimental.pallas import tpu as pltpu


def if_kernel(x_ref, o_ref):
    x = x_ref[...]

    # Predicate computed once (XLU reduction + one compare).
    pred = jnp.sum(x) > 0

    # Hoisted elementwise double: VALU work that overlaps the XLU reduction.
    y = x + x

    @pl.when(pred)
    def _():                      # "then" branch: just the store
        o_ref[...] = y

    @pl.when(jnp.logical_not(pred))
    def _():                      # "else" branch: fp32-faithful MXU matmul
        o_ref[...] = jnp.dot(
            x, x,
            precision=jax.lax.Precision.HIGHEST,
            preferred_element_type=jnp.float32,
        ).astype(o_ref.dtype)


def if_module_ref(x):
    # Pure-JAX reference with the same semantics (branch selected by sum sign).
    return jax.lax.cond(
        jnp.sum(x) > 0,
        lambda a: a + a,
        lambda a: jnp.matmul(a, a, precision=jax.lax.Precision.HIGHEST),
        x,
    )


# Conservative ceiling for the gridless full-resident path: stay well under
# v7x's 64 MiB physical VMEM (v5e/v6e have 128 MiB, so this is safe everywhere).
_VMEM_CEILING_BYTES = 48 << 20


def if_module_forward(x):
    assert x.ndim == 2 and x.shape[0] == x.shape[1], "IfModule needs a square matrix"
    n = x.shape[0]
    nbytes = int(x.size) * x.dtype.itemsize

    # Footprint estimate for the full-resident kernel: double-buffered input +
    # output blocks plus the f32 matmul intermediate, with fixed headroom.
    vmem_needed = 6 * nbytes + (4 << 20)
    if vmem_needed > _VMEM_CEILING_BYTES:
        # Beyond a single VMEM block: let XLA tile it.
        # TODO(synk): two-phase tiled Pallas variant (global-sum reduction pass
        # feeding a scalar-prefetched per-tile branch pass with >=256 MXU tiles
        # on v6e/v7x, 128 tiles on v5e, parallel dimension_semantics for the
        # two v7x TensorCores).
        return if_module_ref(x)

    cost = pl.CostEstimate(
        flops=2 * n * n * n,          # heavier (matmul) branch
        transcendentals=0,
        bytes_accessed=2 * nbytes,    # read x once, write o once
    )

    return pl.pallas_call(
        if_kernel,
        out_shape=jax.ShapeDtypeStruct(x.shape, x.dtype),
        in_specs=[pl.BlockSpec(memory_space=pltpu.MemorySpace.VMEM)],
        out_specs=pl.BlockSpec(memory_space=pltpu.MemorySpace.VMEM),
        cost_estimate=cost,
        compiler_params=pltpu.CompilerParams(vmem_limit_bytes=vmem_needed),
    )(x)


if __name__ == "__main__":
    N = 128  # square so matmul(x, x) is well-defined; MXU / (8,128) aligned
    key = jax.random.PRNGKey(0)

    # Case 1: force a positive sum -> x + x branch.
    x_pos = jax.random.normal(key, (N, N), dtype=jnp.float32) + 0.5
    ref_pos = if_module_ref(x_pos)
    out_pos = jax.block_until_ready(if_module_forward(x_pos))
    assert jnp.allclose(out_pos, ref_pos, atol=1e-6, rtol=1e-6), "x + x branch mismatch"

    # Case 2: force a negative sum -> x @ x branch (fp32 HIGHEST precision).
    x_neg = jax.random.normal(key, (N, N), dtype=jnp.float32) - 0.5
    ref_neg = if_module_ref(x_neg)
    out_neg = jax.block_until_ready(if_module_forward(x_neg))
    assert jnp.allclose(out_neg, ref_neg, atol=1e-4, rtol=1e-4), "x @ x branch mismatch"

    print("KERNEL_OK")
</pallas_src>

<mosaic_0001>
module attributes {stable_mosaic.version = 11 : i64} {
  func.func @if_kernel(%arg0: memref<128x128xf32, #tpu.memory_space<vmem>>, %arg1: memref<128x128xf32, #tpu.memory_space<vmem>>) attributes {dimension_semantics = [], scalar_prefetch = 0 : i64, scratch_operands = 0 : i64, tpu.core_type = #tpu.core_type<tc>} {
    %c0 = arith.constant 0 : index
    %c0_0 = arith.constant 0 : index
    %0 = vector.load %arg0[%c0, %c0_0] : memref<128x128xf32, #tpu.memory_space<vmem>>, vector<128x128xf32>
    %1 = vector.shape_cast %0 : vector<128x128xf32> to vector<1x128x128xf32>
    %cst = arith.constant dense<0.000000e+00> : vector<1xf32>
    %2 = vector.multi_reduction <add>, %1, %cst [1, 2] : vector<1x128x128xf32> to vector<1xf32>
    %3 = vector.shape_cast %2 : vector<1xf32> to vector<1x1x1xf32>
    %4 = vector.extract %3[0, 0, 0] : f32 from vector<1x1x1xf32>
    %cst_1 = arith.constant 0.000000e+00 : f32
    %5 = arith.cmpf ogt, %4, %cst_1 : f32
    %6 = arith.addf %0, %0 : vector<128x128xf32>
    %7 = arith.extui %5 : i1 to i32
    %c0_i32 = arith.constant 0 : i32
    %8 = arith.cmpi ne, %7, %c0_i32 : i32
    scf.if %8 {
      %c0_3 = arith.constant 0 : index
      %c0_4 = arith.constant 0 : index
      %12 = vector.load %arg1[%c0_3, %c0_4] : memref<128x128xf32, #tpu.memory_space<vmem>>, vector<128x128xf32>
      tpu.vector_store %arg1[%c0_3, %c0_4], %6 {strides = array<i32>} : memref<128x128xf32, #tpu.memory_space<vmem>>, vector<128x128xf32>,
    } else {
    }
    %true = arith.constant true
    %9 = arith.xori %5, %true : i1
    %10 = arith.extui %9 : i1 to i32
    %c0_i32_2 = arith.constant 0 : i32
    %11 = arith.cmpi ne, %10, %c0_i32_2 : i32
    scf.if %11 {
      %cst_3 = arith.constant dense<0.000000e+00> : vector<128x128xf32>
      %12 = tpu.matmul %0, %0, %cst_3 {dimension_numbers = #tpu.dot_dimension_numbers<[1], [0], [0], [1], [0, 0, 1, 1], [], []>, precision = #tpu.contract_precision<fp32>} : vector<128x128xf32>, vector<128x128xf32>, vector<128x128xf32> -> vector<128x128xf32>
      %c0_4 = arith.constant 0 : index
      %c0_5 = arith.constant 0 : index
      %13 = vector.load %arg1[%c0_4, %c0_5] : memref<128x128xf32, #tpu.memory_space<vmem>>, vector<128x128xf32>
      tpu.vector_store %arg1[%c0_4, %c0_5], %12 {strides = array<i32>} : memref<128x128xf32, #tpu.memory_space<vmem>>, vector<128x128xf32>,
    } else {
    }
    return
  }
}

</mosaic_0001>

<llo_original>
// kernel: tpu_custom_call.1
$region0: #{tpu_custom_call.1}
  #allocation0 [shape = 'u32[]', space=smem, size = 0x4, offset = 0x4, fixed_abs, tag = 'smem constant byte address 0x4 - core index']
  #allocation1 [shape = 'u32[144,128]{1,0:T(1,128)}', space=vmem, size = 0x12000, scoped, tag = 'internal scratch']
  %s0 = inlined_call_operand.hbm [shape: f32[128,128], index: 0, kind: input, shape index: {}]
  %s1 = inlined_call_operand.hbm [shape: f32[128,128], index: 1, kind: output, shape index: {}]
  %s2 = sld [smem:[#allocation0]]
  $region26: #{tpu_custom_call.1} parent=0
    _
  %s4 = ssub.s32 1, %s2
  %s5 = scalar_select 0, %s4, %s2
  $region1: #{tpu_custom_call.1} parent=0
    #allocation2 [shape = 'u8[65536]{0}', space=vmem, size = 0x10000, scoped, tag = 'input window, operand 0, single buffered']
    #allocation3 [shape = 's32[1]{0}', space=sflag, size = 0x4, scoped, tag = 'scoped memory for tpu_custom_call.1']
    #allocation4 [shape = 's32[1]{0}', space=sflag, size = 0x4, scoped, tag = 'scoped memory for tpu_custom_call.1']
    #allocation5 [shape = 'u8[65536]{0}', space=vmem, size = 0x10000, scoped, tag = 'output window, operand 0, single buffered']
    %6 = vsyncpa [#allocation3], 0
    %7 = vsyncpa [#allocation4], 0
    // Predicated region
    $region2: #{tpu_custom_call.1} parent=1 // pred_check
      _
    $region3: #{tpu_custom_call.1} parent=1 // pred_check_branch
      %9 = sbr.rel (0) target = $region5
    $region4: #{tpu_custom_call.1} parent=1 // pred_region
      %s11 = ssub.s32 2048, 2048
      %12 = vsyncadd [#allocation3], %s11
      %s13 = sshll.u32 [#allocation2], 4
      %s14 = int_to_ptr.vmem [resolvable:$true] %s13
      %19 = dma.hbm_to_vmem [thread:$0]  %s0, 2048, %s14, [#allocation3], 128, 128, 8
    $region5: #{tpu_custom_call.1} parent=1 // pred_fallthru
      _
    // Predicated region
    $region6: #{tpu_custom_call.1} parent=1 // pred_check
      _
    $region7: #{tpu_custom_call.1} parent=1 // pred_check_branch
      %21 = sbr.rel (0) target = $region9
    $region8: #{tpu_custom_call.1} parent=1 // pred_region
      %22 = dma.done [#allocation3], 2048
    $region9: #{tpu_custom_call.1} parent=1 // pred_fallthru
      _
    %v23 = vld [vmem:[#allocation2] sm:$0xff]
    %v24 = vld [vmem:[#allocation2 + $0x8] sm:$0xff]
    %v25 = vld [vmem:[#allocation2 + $0x10] sm:$0xff]
    %v26 = vld [vmem:[#allocation2 + $0x18] sm:$0xff]
    %v27 = vld [vmem:[#allocation2 + $0x20] sm:$0xff]
    %v28 = vld [vmem:[#allocation2 + $0x28] sm:$0xff]
    %v29 = vld [vmem:[#allocation2 + $0x30] sm:$0xff]
    %v30 = vld [vmem:[#allocation2 + $0x38] sm:$0xff]
    %v31 = vld [vmem:[#allocation2 + $0x40] sm:$0xff]
    %v32 = vld [vmem:[#allocation2 + $0x48] sm:$0xff]
    %v33 = vld [vmem:[#allocation2 + $0x50] sm:$0xff]
    %v34 = vld [vmem:[#allocation2 + $0x58] sm:$0xff]
    %v35 = vld [vmem:[#allocation2 + $0x60] sm:$0xff]
    %v36 = vld [vmem:[#allocation2 + $0x68] sm:$0xff]
    %v37 = vld [vmem:[#allocation2 + $0x70] sm:$0xff]
    %v38 = vld [vmem:[#allocation2 + $0x78] sm:$0xff]
    %v39 = vadd.f32 %v23, %v24
    %v40 = vadd.f32 %v39, %v25
    %v41 = vadd.f32 %v40, %v26
    %v42 = vadd.f32 %v41, %v27
    %v43 = vadd.f32 %v42, %v28
    %v44 = vadd.f32 %v43, %v29
    %v45 = vadd.f32 %v44, %v30
    %v46 = vadd.f32 %v45, %v31
    %v47 = vadd.f32 %v46, %v32
    %v48 = vadd.f32 %v47, %v33
    %v49 = vadd.f32 %v48, %v34
    %v50 = vadd.f32 %v49, %v35
    %v51 = vadd.f32 %v50, %v36
    %v52 = vadd.f32 %v51, %v37
    %v53 = vadd.f32 %v52, %v38
    %54 = vadd.xlane.f32.xlu0 %v53
    %v55 = vpop.xlane.xlu0 %54
    %v56 = vrot.slane %v55, 4
    %v57 = vadd.f32 %v55, %v56
    %v58 = vrot.slane %v57, 2
    %v59 = vadd.f32 %v57, %v58
    %v60 = vrot.slane %v59, 1
    %v61 = vadd.f32 %v59, %v60
    %s62 = vtos %v61
    %p63 = scmp.gt.f32.partialorder %s62, 0.0
    %v64 = vadd.f32 %v23, %v23
    %v65 = vadd.f32 %v24, %v24
    %v66 = vadd.f32 %v25, %v25
    %v67 = vadd.f32 %v26, %v26
    %v68 = vadd.f32 %v27, %v27
    %v69 = vadd.f32 %v28, %v28
    %v70 = vadd.f32 %v29, %v29
    %v71 = vadd.f32 %v30, %v30
    %v72 = vadd.f32 %v31, %v31
    %v73 = vadd.f32 %v32, %v32
    %v74 = vadd.f32 %v33, %v33
    %v75 = vadd.f32 %v34, %v34
    %v76 = vadd.f32 %v35, %v35
    %v77 = vadd.f32 %v36, %v36
    %v78 = vadd.f32 %v37, %v37
    %v79 = vadd.f32 %v38, %v38
    // Predicated region
    $region10: #{tpu_custom_call.1} parent=1 // pred_check
      %p80 = pneg %p63
    $region11: #{tpu_custom_call.1} parent=1 // pred_check_branch
      %82 = sbr.rel (%p80) target = $region13
    $region12: #{tpu_custom_call.1} parent=1 // pred_region
      %83 = vst [vmem:[#allocation5] sm:$0xff] %v64
      %84 = vst [vmem:[#allocation5 + $0x8] sm:$0xff] %v65
      %85 = vst [vmem:[#allocation5 + $0x10] sm:$0xff] %v66
      %86 = vst [vmem:[#allocation5 + $0x18] sm:$0xff] %v67
      %87 = vst [vmem:[#allocation5 + $0x20] sm:$0xff] %v68
      %88 = vst [vmem:[#allocation5 + $0x28] sm:$0xff] %v69
      %89 = vst [vmem:[#allocation5 + $0x30] sm:$0xff] %v70
      %90 = vst [vmem:[#allocation5 + $0x38] sm:$0xff] %v71
      %91 = vst [vmem:[#allocation5 + $0x40] sm:$0xff] %v72
      %92 = vst [vmem:[#allocation5 + $0x48] sm:$0xff] %v73
      %93 = vst [vmem:[#allocation5 + $0x50] sm:$0xff] %v74
      %94 = vst [vmem:[#allocation5 + $0x58] sm:$0xff] %v75
      %95 = vst [vmem:[#allocation5 + $0x60] sm:$0xff] %v76
      %96 = vst [vmem:[#allocation5 + $0x68] sm:$0xff] %v77
      %97 = vst [vmem:[#allocation5 + $0x70] sm:$0xff] %v78
      %98 = vst [vmem:[#allocation5 + $0x78] sm:$0xff] %v79
    $region13: #{tpu_custom_call.1} parent=1 // pred_fallthru
      _
    %p99 = pneg %p63
    // Predicated region
    $region14: #{tpu_custom_call.1} parent=1 // pred_check
      _
    $region15: #{tpu_custom_call.1} parent=1 // pred_check_branch
      %101 = sbr.rel (%p63) target = $region17
    $region16: #{tpu_custom_call.1} parent=1 // pred_region
      %102 = vmatprep.subr.mxu0 0.0
      %v103 = vand.u32 %v23, 4294901760
      %104 = vmatpush1.msra.mxu0 %v103
      %105 = vmatprep.subr.mxu0 0.0
      %v106 = vand.u32 %v24, 4294901760
      %107 = vmatpush1.msra.mxu0 %v106
      %108 = vmatprep.subr.mxu0 0.0
      %v109 = vand.u32 %v25, 4294901760
      %110 = vmatpush1.msra.mxu0 %v109
      %111 = vmatprep.subr.mxu0 0.0
      %v112 = vand.u32 %v26, 4294901760
      %113 = vmatpush1.msra.mxu0 %v112
      %114 = vmatprep.subr.mxu0 0.0
      %v115 = vand.u32 %v27, 4294901760
      %116 = vmatpush1.msra.mxu0 %v115
      %117 = vmatprep.subr.mxu0 0.0
      %v118 = vand.u32 %v28, 4294901760
      %119 = vmatpush1.msra.mxu0 %v118
      %120 = vmatprep.subr.mxu0 0.0
      %v121 = vand.u32 %v29, 4294901760
      %122 = vmatpush1.msra.mxu0 %v121
      %123 = vmatprep.subr.mxu0 0.0
      %v124 = vand.u32 %v30, 4294901760
      %125 = vmatpush1.msra.mxu0 %v124
      %126 = vmatprep.subr.mxu0 0.0
      %v127 = vand.u32 %v31, 4294901760
      %128 = vmatpush1.msra.mxu0 %v127
      %129 = vmatprep.subr.mxu0 0.0
      %v130 = vand.u32 %v32, 4294901760
      %131 = vmatpush1.msra.mxu0 %v130
      %132 = vmatprep.subr.mxu0 0.0
      %v133 = vand.u32 %v33, 4294901760
      %134 = vmatpush1.msra.mxu0 %v133
      %135 = vmatprep.subr.mxu0 0.0
      %v136 = vand.u32 %v34, 4294901760
      %137 = vmatpush1.msra.mxu0 %v136
      %138 = vmatprep.subr.mxu0 0.0
      %v139 = vand.u32 %v35, 4294901760
      %140 = vmatpush1.msra.mxu0 %v139
      %141 = vmatprep.subr.mxu0 0.0
      %v142 = vand.u32 %v36, 4294901760
      %143 = vmatpush1.msra.mxu0 %v142
      %144 = vmatprep.subr.mxu0 0.0
      %v145 = vand.u32 %v37, 4294901760
      %146 = vmatpush1.msra.mxu0 %v145
      %147 = vmatprep.subr.mxu0 0.0
      %v148 = vand.u32 %v38, 4294901760
      %149 = vmatpush1.msra.mxu0 %v148
      %150 = vmatprep.subr.mxu0 0.0
      %151 = vmatpush1.msra.mxu0 0.0
      %152 = vmatprep.subr.mxu0 0.0
      %153 = vmatpush1.msra.mxu0 0.0
      %154 = vmatprep.subr.mxu0 0.0
      %155 = vmatpush1.msra.mxu0 0.0
      %156 = vmatprep.subr.mxu0 0.0
      %157 = vmatpush1.msra.mxu0 0.0
      %158 = vmatprep.subr.mxu0 0.0
      %159 = vmatpush1.msra.mxu0 0.0
      %160 = vmatprep.subr.mxu0 0.0
      %161 = vmatpush1.msra.mxu0 0.0
      %162 = vmatprep.subr.mxu0 0.0
      %163 = vmatpush1.msra.mxu0 0.0
      %164 = vmatprep.subr.mxu0 0.0
      %165 = vmatpush1.msra.mxu0 0.0
      %166 = vmatprep.subr.mxu0 0.0
      %167 = vmatpush1.msra.mxu0 0.0
      %168 = vmatprep.subr.mxu0 0.0
      %169 = vmatpush1.msra.mxu0 0.0
      %170 = vmatprep.subr.mxu0 0.0
      %171 = vmatpush1.msra.mxu0 0.0
      %172 = vmatprep.subr.mxu0 0.0
      %173 = vmatpush1.msra.mxu0 0.0
      %174 = vmatprep.subr.mxu0 0.0
      %175 = vmatpush1.msra.mxu0 0.0
      %176 = vmatprep.subr.mxu0 0.0
      %177 = vmatpush1.msra.mxu0 0.0
      %178 = vmatprep.subr.mxu0 0.0
      %179 = vmatpush1.msra.mxu0 0.0
      %180 = vmatprep.subr.mxu0 0.0
      %181 = vmatpush1.msra.mxu0 0.0
      %182 = vmatprep.mubr.f32.mxu0 0.0
      %v183 = vand.u32 %v23, 4294901760
      %v184 = vsub.f32 %v23, %v183
      %v185 = vand.u32 %v184, 4294901760
      %v186 = vsub.f32 %v184, %v185
      %v187 = vand.u32 %v186, 4294901760
      %188 = vmatmul.mubr.f32.gmra.mrb[0].mxu0 %v187
      %v189 = vpop.f32.mrb[0].mxu0
      %v190 = vadd.f32 0.0, %v189
      %v191 = vpop.f32.mrb[0].mxu0
      %192 = vmatprep.mubr.f32.mxu0 0.0
      %v193 = vand.u32 %v24, 4294901760
      %v194 = vsub.f32 %v24, %v193
      %v195 = vand.u32 %v194, 4294901760
      %v196 = vsub.f32 %v194, %v195
      %v197 = vand.u32 %v196, 4294901760
      %198 = vmatmul.mubr.f32.gmra.mrb[0].mxu0 %v197
      %v199 = vpop.f32.mrb[0].mxu0
      %v200 = vadd.f32 0.0, %v199
      %v201 = vpop.f32.mrb[0].mxu0
      %202 = vmatprep.mubr.f32.mxu0 0.0
      %v203 = vand.u32 %v25, 4294901760
      %v204 = vsub.f32 %v25, %v203
      %v205 = vand.u32 %v204, 4294901760
      %v206 = vsub.f32 %v204, %v205
      %v207 = vand.u32 %v206, 4294901760
      %208 = vmatmul.mubr.f32.gmra.mrb[0].mxu0 %v207
      %v209 = vpop.f32.mrb[0].mxu0
      %v210 = vadd.f32 0.0, %v209
      %v211 = vpop.f32.mrb[0].mxu0
      %212 = vmatprep.mubr.f32.mxu0 0.0
      %v213 = vand.u32 %v26, 4294901760
      %v214 = vsub.f32 %v26, %v213
      %v215 = vand.u32 %v214, 4294901760
      %v216 = vsub.f32 %v214, %v215
      %v217 = vand.u32 %v216, 4294901760
      %218 = vmatmul.mubr.f32.gmra.mrb[0].mxu0 %v217
      %v219 = vpop.f32.mrb[0].mxu0
      %v220 = vadd.f32 0.0, %v219
      %v221 = vpop.f32.mrb[0].mxu0
      %222 = vmatprep.mubr.f32.mxu0 0.0
      %v223 = vand.u32 %v27, 4294901760
      %v224 = vsub.f32 %v27, %v223
      %v225 = vand.u32 %v224, 4294901760
      %v226 = vsub.f32 %v224, %v225
      %v227 = vand.u32 %v226, 4294901760
      %228 = vmatmul.mubr.f32.gmra.mrb[0].mxu0 %v227
      %v229 = vpop.f32.mrb[0].mxu0
      %v230 = vadd.f32 0.0, %v229
      %v231 = vpop.f32.mrb[0].mxu0
      %232 = vmatprep.mubr.f32.mxu0 0.0
      %v233 = vand.u32 %v28, 4294901760
      %v234 = vsub.f32 %v28, %v233
      %v235 = vand.u32 %v234, 4294901760
      %v236 = vsub.f32 %v234, %v235
      %v237 = vand.u32 %v236, 4294901760
      %238 = vmatmul.mubr.f32.gmra.mrb[0].mxu0 %v237
      %v239 = vpop.f32.mrb[0].mxu0
      %v240 = vadd.f32 0.0, %v239
      %v241 = vpop.f32.mrb[0].mxu0
      %242 = vmatprep.mubr.f32.mxu0 0.0
      %v243 = vand.u32 %v29, 4294901760
      %v244 = vsub.f32 %v29, %v243
      %v245 = vand.u32 %v244, 4294901760
      %v246 = vsub.f32 %v244, %v245
      %v247 = vand.u32 %v246, 4294901760
      %248 = vmatmul.mubr.f32.gmra.mrb[0].mxu0 %v247
      %v249 = vpop.f32.mrb[0].mxu0
      %v250 = vadd.f32 0.0, %v249
      %v251 = vpop.f32.mrb[0].mxu0
      %252 = vmatprep.mubr.f32.mxu0 0.0
      %v253 = vand.u32 %v30, 4294901760
      %v254 = vsub.f32 %v30, %v253
      %v255 = vand.u32 %v254, 4294901760
      %v256 = vsub.f32 %v254, %v255
      %v257 = vand.u32 %v256, 4294901760
      %258 = vmatmul.mubr.f32.gmra.mrb[0].mxu0 %v257
      %v259 = vpop.f32.mrb[0].mxu0
      %v260 = vadd.f32 0.0, %v259
      %v261 = vpop.f32.mrb[0].mxu0
      %262 = vmatprep.mubr.f32.mxu0 0.0
      %v263 = vand.u32 %v31, 4294901760
      %v264 = vsub.f32 %v31, %v263
      %v265 = vand.u32 %v264, 4294901760
      %v266 = vsub.f32 %v264, %v265
      %v267 = vand.u32 %v266, 4294901760
      %268 = vmatmul.mubr.f32.gmra.mrb[0].mxu0 %v267
      %v269 = vpop.f32.mrb[0].mxu0
      %v270 = vadd.f32 0.0, %v269
      %v271 = vpop.f32.mrb[0].mxu0
      %272 = vmatprep.mubr.f32.mxu0 0.0
      %v273 = vand.u32 %v32, 4294901760
      %v274 = vsub.f32 %v32, %v273
      %v275 = vand.u32 %v274, 4294901760
      %v276 = vsub.f32 %v274, %v275
      %v277 = vand.u32 %v276, 4294901760
      %278 = vmatmul.mubr.f32.gmra.mrb[0].mxu0 %v277
      %v279 = vpop.f32.mrb[0].mxu0
      %v280 = vadd.f32 0.0, %v279
      %v281 = vpop.f32.mrb[0].mxu0
      %282 = vmatprep.mubr.f32.mxu0 0.0
      %v283 = vand.u32 %v33, 4294901760
      %v284 = vsub.f32 %v33, %v283
      %v285 = vand.u32 %v284, 4294901760
      %v286 = vsub.f32 %v284, %v285
      %v287 = vand.u32 %v286, 4294901760
      %288 = vmatmul.mubr.f32.gmra.mrb[0].mxu0 %v287
      %v289 = vpop.f32.mrb[0].mxu0
      %v290 = vadd.f32 0.0, %v289
      %v291 = vpop.f32.mrb[0].mxu0
      %292 = vmatprep.mubr.f32.mxu0 0.0
      %v293 = vand.u32 %v34, 4294901760
      %v294 = vsub.f32 %v34, %v293
      %v295 = vand.u32 %v294, 4294901760
      %v296 = vsub.f32 %v294, %v295
      %v297 = vand.u32 %v296, 4294901760
      %298 = vmatmul.mubr.f32.gmra.mrb[0].mxu0 %v297
      %v299 = vpop.f32.mrb[0].mxu0
      %v300 = vadd.f32 0.0, %v299
      %v301 = vpop.f32.mrb[0].mxu0
      %302 = vmatprep.mubr.f32.mxu0 0.0
      %v303 = vand.u32 %v35, 4294901760
      %v304 = vsub.f32 %v35, %v303
      %v305 = vand.u32 %v304, 4294901760
      %v306 = vsub.f32 %v304, %v305
      %v307 = vand.u32 %v306, 4294901760
      %308 = vmatmul.mubr.f32.gmra.mrb[0].mxu0 %v307
      %v309 = vpop.f32.mrb[0].mxu0
      %v310 = vadd.f32 0.0, %v309
      %v311 = vpop.f32.mrb[0].mxu0
      %312 = vmatprep.mubr.f32.mxu0 0.0
      %v313 = vand.u32 %v36, 4294901760
      %v314 = vsub.f32 %v36, %v313
      %v315 = vand.u32 %v314, 4294901760
      %v316 = vsub.f32 %v314, %v315
      %v317 = vand.u32 %v316, 4294901760
      %318 = vmatmul.mubr.f32.gmra.mrb[0].mxu0 %v317
      %v319 = vpop.f32.mrb[0].mxu0
      %v320 = vadd.f32 0.0, %v319
      %v321 = vpop.f32.mrb[0].mxu0
      %322 = vmatprep.mubr.f32.mxu0 0.0
      %v323 = vand.u32 %v37, 4294901760
      %v324 = vsub.f32 %v37, %v323
      %v325 = vand.u32 %v324, 4294901760
      %v326 = vsub.f32 %v324, %v325
      %v327 = vand.u32 %v326, 4294901760
      %328 = vmatmul.mubr.f32.gmra.mrb[0].mxu0 %v327
      %v329 = vpop.f32.mrb[0].mxu0
      %v330 = vadd.f32 0.0, %v329
      %v331 = vpop.f32.mrb[0].mxu0
      %332 = vmatprep.mubr.f32.mxu0 0.0
      %v333 = vand.u32 %v38, 4294901760
      %v334 = vsub.f32 %v38, %v333
      %v335 = vand.u32 %v334, 4294901760
      %v336 = vsub.f32 %v334, %v335
      %v337 = vand.u32 %v336, 4294901760
      %338 = vmatmul.mubr.f32.gmra.mrb[0].mxu0 %v337
      %v339 = vpop.f32.mrb[0].mxu0
      %v340 = vadd.f32 0.0, %v339
      %v341 = vpop.f32.mrb[0].mxu0
      %342 = vdwg.mxu0
      %343 = vmatprep.subr.mxu0 0.0
      %v344 = vand.u32 %v23, 4294901760
      %v345 = vsub.f32 %v23, %v344
      %v346 = vand.u32 %v345, 4294901760
      %v347 = vsub.f32 %v345, %v346
      %v348 = vand.u32 %v347, 4294901760
      %349 = vmatpush1.msra.mxu0 %v348
      %350 = vmatprep.subr.mxu0 0.0
      %v351 = vand.u32 %v24, 4294901760
      %v352 = vsub.f32 %v24, %v351
      %v353 = vand.u32 %v352, 4294901760
      %v354 = vsub.f32 %v352, %v353
      %v355 = vand.u32 %v354, 4294901760
      %356 = vmatpush1.msra.mxu0 %v355
      %357 = vmatprep.subr.mxu0 0.0
      %v358 = vand.u32 %v25, 4294901760
      %v359 = vsub.f32 %v25, %v358
      %v360 = vand.u32 %v359, 4294901760
      %v361 = vsub.f32 %v359, %v360
      %v362 = vand.u32 %v361, 4294901760
      %363 = vmatpush1.msra.mxu0 %v362
      %364 = vmatprep.subr.mxu0 0.0
      %v365 = vand.u32 %v26, 4294901760
      %v366 = vsub.f32 %v26, %v365
      %v367 = vand.u32 %v366, 4294901760
      %v368 = vsub.f32 %v366, %v367
      %v369 = vand.u32 %v368, 4294901760
      %370 = vmatpush1.msra.mxu0 %v369
      %371 = vmatprep.subr.mxu0 0.0
      %v372 = vand.u32 %v27, 4294901760
      %v373 = vsub.f32 %v27, %v372
      %v374 = vand.u32 %v373, 4294901760
      %v375 = vsub.f32 %v373, %v374
      %v376 = vand.u32 %v375, 4294901760
      %377 = vmatpush1.msra.mxu0 %v376
      %378 = vmatprep.subr.mxu0 0.0
      %v379 = vand.u32 %v28, 4294901760
      %v380 = vsub.f32 %v28, %v379
      %v381 = vand.u32 %v380, 4294901760
      %v382 = vsub.f32 %v380, %v381
      %v383 = vand.u32 %v382, 4294901760
      %384 = vmatpush1.msra.mxu0 %v383
      %385 = vmatprep.subr.mxu0 0.0
      %v386 = vand.u32 %v29, 4294901760
      %v387 = vsub.f32 %v29, %v386
      %v388 = vand.u32 %v387, 4294901760
      %v389 = vsub.f32 %v387, %v388
      %v390 = vand.u32 %v389, 4294901760
      %391 = vmatpush1.msra.mxu0 %v390
      %392 = vmatprep.subr.mxu0 0.0
      %v393 = vand.u32 %v30, 4294901760
      %v394 = vsub.f32 %v30, %v393
      %v395 = vand.u32 %v394, 4294901760
      %v396 = vsub.f32 %v394, %v395
      %v397 = vand.u32 %v396, 4294901760
      %398 = vmatpush1.msra.mxu0 %v397
      %399 = vmatprep.subr.mxu0 0.0
      %v400 = vand.u32 %v31, 4294901760
      %v401 = vsub.f32 %v31, %v400
      %v402 = vand.u32 %v401, 4294901760
      %v403 = vsub.f32 %v401, %v402
      %v404 = vand.u32 %v403, 4294901760
      %405 = vmatpush1.msra.mxu0 %v404
      %406 = vmatprep.subr.mxu0 0.0
      %v407 = vand.u32 %v32, 4294901760
      %v408 = vsub.f32 %v32, %v407
      %v409 = vand.u32 %v408, 4294901760
      %v410 = vsub.f32 %v408, %v409
      %v411 = vand.u32 %v410, 4294901760
      %412 = vmatpush1.msra.mxu0 %v411
      %413 = vmatprep.subr.mxu0 0.0
      %v414 = vand.u32 %v33, 4294901760
      %v415 = vsub.f32 %v33, %v414
      %v416 = vand.u32 %v415, 4294901760
      %v417 = vsub.f32 %v415, %v416
      %v418 = vand.u32 %v417, 4294901760
      %419 = vmatpush1.msra.mxu0 %v418
      %420 = vmatprep.subr.mxu0 0.0
      %v421 = vand.u32 %v34, 4294901760
      %v422 = vsub.f32 %v34, %v421
      %v423 = vand.u32 %v422, 4294901760
      %v424 = vsub.f32 %v422, %v423
      %v425 = vand.u32 %v424, 4294901760
      %426 = vmatpush1.msra.mxu0 %v425
      %427 = vmatprep.subr.mxu0 0.0
      %v428 = vand.u32 %v35, 4294901760
      %v429 = vsub.f32 %v35, %v428
      %v430 = vand.u32 %v429, 4294901760
      %v431 = vsub.f32 %v429, %v430
      %v432 = vand.u32 %v431, 4294901760
      %433 = vmatpush1.msra.mxu0 %v432
      %434 = vmatprep.subr.mxu0 0.0
      %v435 = vand.u32 %v36, 4294901760
      %v436 = vsub.f32 %v36, %v435
      %v437 = vand.u32 %v436, 4294901760
      %v438 = vsub.f32 %v436, %v437
      %v439 = vand.u32 %v438, 4294901760
      %440 = vmatpush1.msra.mxu0 %v439
      %441 = vmatprep.subr.mxu0 0.0
      %v442 = vand.u32 %v37, 4294901760
      %v443 = vsub.f32 %v37, %v442
      %v444 = vand.u32 %v443, 4294901760
      %v445 = vsub.f32 %v443, %v444
      %v446 = vand.u32 %v445, 4294901760
      %447 = vmatpush1.msra.mxu0 %v446
      %448 = vmatprep.subr.mxu0 0.0
      %v449 = vand.u32 %v38, 4294901760
      %v450 = vsub.f32 %v38, %v449
      %v451 = vand.u32 %v450, 4294901760
      %v452 = vsub.f32 %v450, %v451
      %v453 = vand.u32 %v452, 4294901760
      %454 = vmatpush1.msra.mxu0 %v453
      %455 = vmatprep.subr.mxu0 0.0
      %456 = vmatpush1.msra.mxu0 0.0
      %457 = vmatprep.subr.mxu0 0.0
      %458 = vmatpush1.msra.mxu0 0.0
      %459 = vmatprep.subr.mxu0 0.0
      %460 = vmatpush1.msra.mxu0 0.0
      %461 = vmatprep.subr.mxu0 0.0
      %462 = vmatpush1.msra.mxu0 0.0
      %463 = vmatprep.subr.mxu0 0.0
      %464 = vmatpush1.msra.mxu0 0.0
      %465 = vmatprep.subr.mxu0 0.0
      %466 = vmatpush1.msra.mxu0 0.0
      %467 = vmatprep.subr.mxu0 0.0
      %468 = vmatpush1.msra.mxu0 0.0
      %469 = vmatprep.subr.mxu0 0.0
      %470 = vmatpush1.msra.mxu0 0.0
      %471 = vmatprep.subr.mxu0 0.0
      %472 = vmatpush1.msra.mxu0 0.0
      %473 = vmatprep.subr.mxu0 0.0
      %474 = vmatpush1.msra.mxu0 0.0
      %475 = vmatprep.subr.mxu0 0.0
      %476 = vmatpush1.msra.mxu0 0.0
      %477 = vmatprep.subr.mxu0 0.0
      %478 = vmatpush1.msra.mxu0 0.0
      %479 = vmatprep.subr.mxu0 0.0
      %480 = vmatpush1.msra.mxu0 0.0
      %481 = vmatprep.subr.mxu0 0.0
      %482 = vmatpush1.msra.mxu0 0.0
      %483 = vmatprep.subr.mxu0 0.0
      %484 = vmatpush1.msra.mxu0 0.0
      %485 = vmatprep.subr.mxu0 0.0
      %486 = vmatpush1.msra.mxu0 0.0
      %487 = vmatprep.mubr.f32.mxu0 0.0
      %v488 = vand.u32 %v23, 4294901760
      %489 = vmatmul.mubr.f32.gmra.mrb[0].mxu0 %v488
      %v490 = vpop.f32.mrb[0].mxu0
      %v491 = vadd.f32 %v190, %v490
      %v492 = vpop.f32.mrb[0].mxu0
      %493 = vmatprep.mubr.f32.mxu0 0.0
      %v494 = vand.u32 %v24, 4294901760
      %495 = vmatmul.mubr.f32.gmra.mrb[0].mxu0 %v494
      %v496 = vpop.f32.mrb[0].mxu0
      %v497 = vadd.f32 %v200, %v496
      %v498 = vpop.f32.mrb[0].mxu0
      %499 = vmatprep.mubr.f32.mxu0 0.0
      %v500 = vand.u32 %v25, 4294901760
      %501 = vmatmul.mubr.f32.gmra.mrb[0].mxu0 %v500
      %v502 = vpop.f32.mrb[0].mxu0
      %v503 = vadd.f32 %v210, %v502
      %v504 = vpop.f32.mrb[0].mxu0
      %505 = vmatprep.mubr.f32.mxu0 0.0
      %v506 = vand.u32 %v26, 4294901760
      %507 = vmatmul.mubr.f32.gmra.mrb[0].mxu0 %v506
      %v508 = vpop.f32.mrb[0].mxu0
      %v509 = vadd.f32 %v220, %v508
      %v510 = vpop.f32.mrb[0].mxu0
      %511 = vmatprep.mubr.f32.mxu0 0.0
      %v512 = vand.u32 %v27, 4294901760
      %513 = vmatmul.mubr.f32.gmra.mrb[0].mxu0 %v512
      %v514 = vpop.f32.mrb[0].mxu0
      %v515 = vadd.f32 %v230, %v514
      %v516 = vpop.f32.mrb[0].mxu0
      %517 = vmatprep.mubr.f32.mxu0 0.0
      %v518 = vand.u32 %v28, 4294901760
      %519 = vmatmul.mubr.f32.gmra.mrb[0].mxu0 %v518
      %v520 = vpop.f32.mrb[0].mxu0
      %v521 = vadd.f32 %v240, %v520
      %v522 = vpop.f32.mrb[0].mxu0
      %523 = vmatprep.mubr.f32.mxu0 0.0
      %v524 = vand.u32 %v29, 4294901760
      %525 = vmatmul.mubr.f32.gmra.mrb[0].mxu0 %v524
      %v526 = vpop.f32.mrb[0].mxu0
      %v527 = vadd.f32 %v250, %v526
      %v528 = vpop.f32.mrb[0].mxu0
      %529 = vmatprep.mubr.f32.mxu0 0.0
      %v530 = vand.u32 %v30, 4294901760
      %531 = vmatmul.mubr.f32.gmra.mrb[0].mxu0 %v530
      %v532 = vpop.f32.mrb[0].mxu0
      %v533 = vadd.f32 %v260, %v532
      %v534 = vpop.f32.mrb[0].mxu0
      %535 = vmatprep.mubr.f32.mxu0 0.0
      %v536 = vand.u32 %v31, 4294901760
      %537 = vmatmul.mubr.f32.gmra.mrb[0].mxu0 %v536
      %v538 = vpop.f32.mrb[0].mxu0
      %v539 = vadd.f32 %v270, %v538
      %v540 = vpop.f32.mrb[0].mxu0
      %541 = vmatprep.mubr.f32.mxu0 0.0
      %v542 = vand.u32 %v32, 4294901760
      %543 = vmatmul.mubr.f32.gmra.mrb[0].mxu0 %v542
      %v544 = vpop.f32.mrb[0].mxu0
      %v545 = vadd.f32 %v280, %v544
      %v546 = vpop.f32.mrb[0].mxu0
      %547 = vmatprep.mubr.f32.mxu0 0.0
      %v548 = vand.u32 %v33, 4294901760
      %549 = vmatmul.mubr.f32.gmra.mrb[0].mxu0 %v548
      %v550 = vpop.f32.mrb[0].mxu0
      %v551 = vadd.f32 %v290, %v550
      %v552 = vpop.f32.mrb[0].mxu0
      %553 = vmatprep.mubr.f32.mxu0 0.0
      %v554 = vand.u32 %v34, 4294901760
      %555 = vmatmul.mubr.f32.gmra.mrb[0].mxu0 %v554
      %v556 = vpop.f32.mrb[0].mxu0
      %v557 = vadd.f32 %v300, %v556
      %v558 = vpop.f32.mrb[0].mxu0
      %559 = vmatprep.mubr.f32.mxu0 0.0
      %v560 = vand.u32 %v35, 4294901760
      %561 = vmatmul.mubr.f32.gmra.mrb[0].mxu0 %v560
      %v562 = vpop.f32.mrb[0].mxu0
      %v563 = vadd.f32 %v310, %v562
      %v564 = vpop.f32.mrb[0].mxu0
      %565 = vmatprep.mubr.f32.mxu0 0.0
      %v566 = vand.u32 %v36, 4294901760
      %567 = vmatmul.mubr.f32.gmra.mrb[0].mxu0 %v566
      %v568 = vpop.f32.mrb[0].mxu0
      %v569 = vadd.f32 %v320, %v568
      %v570 = vpop.f32.mrb[0].mxu0
      %571 = vmatprep.mubr.f32.mxu0 0.0
      %v572 = vand.u32 %v37, 4294901760
      %573 = vmatmul.mubr.f32.gmra.mrb[0].mxu0 %v572
      %v574 = vpop.f32.mrb[0].mxu0
      %v575 = vadd.f32 %v330, %v574
      %v576 = vpop.f32.mrb[0].mxu0
      %577 = vmatprep.mubr.f32.mxu0 0.0
      %v578 = vand.u32 %v38, 4294901760
      %579 = vmatmul.mubr.f32.gmra.mrb[0].mxu0 %v578
      %v580 = vpop.f32.mrb[0].mxu0
      %v581 = vadd.f32 %v340, %v580
      %v582 = vpop.f32.mrb[0].mxu0
      %583 = vdwg.mxu0
      %584 = vmatprep.subr.mxu0 0.0
      %v585 = vand.u32 %v23, 4294901760
      %v586 = vsub.f32 %v23, %v585
      %587 = vmatpush1.msra.mxu0 %v586
      %588 = vmatprep.subr.mxu0 0.0
      %v589 = vand.u32 %v24, 4294901760
      %v590 = vsub.f32 %v24, %v589
      %591 = vmatpush1.msra.mxu0 %v590
      %592 = vmatprep.subr.mxu0 0.0
      %v593 = vand.u32 %v25, 4294901760
      %v594 = vsub.f32 %v25, %v593
      %595 = vmatpush1.msra.mxu0 %v594
      %596 = vmatprep.subr.mxu0 0.0
      %v597 = vand.u32 %v26, 4294901760
      %v598 = vsub.f32 %v26, %v597
      %599 = vmatpush1.msra.mxu0 %v598
      %600 = vmatprep.subr.mxu0 0.0
      %v601 = vand.u32 %v27, 4294901760
      %v602 = vsub.f32 %v27, %v601
      %603 = vmatpush1.msra.mxu0 %v602
      %604 = vmatprep.subr.mxu0 0.0
      %v605 = vand.u32 %v28, 4294901760
      %v606 = vsub.f32 %v28, %v605
      %607 = vmatpush1.msra.mxu0 %v606
      %608 = vmatprep.subr.mxu0 0.0
      %v609 = vand.u32 %v29, 4294901760
      %v610 = vsub.f32 %v29, %v609
      %611 = vmatpush1.msra.mxu0 %v610
      %612 = vmatprep.subr.mxu0 0.0
      %v613 = vand.u32 %v30, 4294901760
      %v614 = vsub.f32 %v30, %v613
      %615 = vmatpush1.msra.mxu0 %v614
      %616 = vmatprep.subr.mxu0 0.0
      %v617 = vand.u32 %v31, 4294901760
      %v618 = vsub.f32 %v31, %v617
      %619 = vmatpush1.msra.mxu0 %v618
      %620 = vmatprep.subr.mxu0 0.0
      %v621 = vand.u32 %v32, 4294901760
      %v622 = vsub.f32 %v32, %v621
      %623 = vmatpush1.msra.mxu0 %v622
      %624 = vmatprep.subr.mxu0 0.0
      %v625 = vand.u32 %v33, 4294901760
      %v626 = vsub.f32 %v33, %v625
      %627 = vmatpush1.msra.mxu0 %v626
      %628 = vmatprep.subr.mxu0 0.0
      %v629 = vand.u32 %v34, 4294901760
      %v630 = vsub.f32 %v34, %v629
      %631 = vmatpush1.msra.mxu0 %v630
      %632 = vmatprep.subr.mxu0 0.0
      %v633 = vand.u32 %v35, 4294901760
      %v634 = vsub.f32 %v35, %v633
      %635 = vmatpush1.msra.mxu0 %v634
      %636 = vmatprep.subr.mxu0 0.0
      %v637 = vand.u32 %v36, 4294901760
      %v638 = vsub.f32 %v36, %v637
      %639 = vmatpush1.msra.mxu0 %v638
      %640 = vmatprep.subr.mxu0 0.0
      %v641 = vand.u32 %v37, 4294901760
      %v642 = vsub.f32 %v37, %v641
      %643 = vmatpush1.msra.mxu0 %v642
      %644 = vmatprep.subr.mxu0 0.0
      %v645 = vand.u32 %v38, 4294901760
      %v646 = vsub.f32 %v38, %v645
      %647 = vmatpush1.msra.mxu0 %v646
      %648 = vmatprep.subr.mxu0 0.0
      %649 = vmatpush1.msra.mxu0 0.0
      %650 = vmatprep.subr.mxu0 0.0
      %651 = vmatpush1.msra.mxu0 0.0
      %652 = vmatprep.subr.mxu0 0.0
      %653 = vmatpush1.msra.mxu0 0.0
      %654 = vmatprep.subr.mxu0 0.0
      %655 = vmatpush1.msra.mxu0 0.0
      %656 = vmatprep.subr.mxu0 0.0
      %657 = vmatpush1.msra.mxu0 0.0
      %658 = vmatprep.subr.mxu0 0.0
      %659 = vmatpush1.msra.mxu0 0.0
      %660 = vmatprep.subr.mxu0 0.0
      %661 = vmatpush1.msra.mxu0 0.0
      %662 = vmatprep.subr.mxu0 0.0
      %663 = vmatpush1.msra.mxu0 0.0
      %664 = vmatprep.subr.mxu0 0.0
      %665 = vmatpush1.msra.mxu0 0.0
      %666 = vmatprep.subr.mxu0 0.0
      %667 = vmatpush1.msra.mxu0 0.0
      %668 = vmatprep.subr.mxu0 0.0
      %669 = vmatpush1.msra.mxu0 0.0
      %670 = vmatprep.subr.mxu0 0.0
      %671 = vmatpush1.msra.mxu0 0.0
      %672 = vmatprep.subr.mxu0 0.0
      %673 = vmatpush1.msra.mxu0 0.0
      %674 = vmatprep.subr.mxu0 0.0
      %675 = vmatpush1.msra.mxu0 0.0
      %676 = vmatprep.subr.mxu0 0.0
      %677 = vmatpush1.msra.mxu0 0.0
      %678 = vmatprep.subr.mxu0 0.0
      %679 = vmatpush1.msra.mxu0 0.0
      %680 = vmatprep.mubr.f32.mxu0 0.0
      %v681 = vand.u32 %v23, 4294901760
      %v682 = vsub.f32 %v23, %v681
      %683 = vmatmul.mubr.f32.gmra.mrb[0].mxu0 %v682
      %v684 = vpop.f32.mrb[0].mxu0
      %v685 = vadd.f32 %v491, %v684
      %v686 = vpop.f32.mrb[0].mxu0
      %687 = vmatprep.mubr.f32.mxu0 0.0
      %v688 = vand.u32 %v24, 4294901760
      %v689 = vsub.f32 %v24, %v688
      %690 = vmatmul.mubr.f32.gmra.mrb[0].mxu0 %v689
      %v691 = vpop.f32.mrb[0].mxu0
      %v692 = vadd.f32 %v497, %v691
      %v693 = vpop.f32.mrb[0].mxu0
      %694 = vmatprep.mubr.f32.mxu0 0.0
      %v695 = vand.u32 %v25, 4294901760
      %v696 = vsub.f32 %v25, %v695
      %697 = vmatmul.mubr.f32.gmra.mrb[0].mxu0 %v696
      %v698 = vpop.f32.mrb[0].mxu0
      %v699 = vadd.f32 %v503, %v698
      %v700 = vpop.f32.mrb[0].mxu0
      %701 = vmatprep.mubr.f32.mxu0 0.0
      %v702 = vand.u32 %v26, 4294901760
      %v703 = vsub.f32 %v26, %v702
      %704 = vmatmul.mubr.f32.gmra.mrb[0].mxu0 %v703
      %v705 = vpop.f32.mrb[0].mxu0
      %v706 = vadd.f32 %v509, %v705
      %v707 = vpop.f32.mrb[0].mxu0
      %708 = vmatprep.mubr.f32.mxu0 0.0
      %v709 = vand.u32 %v27, 4294901760
      %v710 = vsub.f32 %v27, %v709
      %711 = vmatmul.mubr.f32.gmra.mrb[0].mxu0 %v710
      %v712 = vpop.f32.mrb[0].mxu0
      %v713 = vadd.f32 %v515, %v712
      %v714 = vpop.f32.mrb[0].mxu0
      %715 = vmatprep.mubr.f32.mxu0 0.0
      %v716 = vand.u32 %v28, 4294901760
      %v717 = vsub.f32 %v28, %v716
      %718 = vmatmul.mubr.f32.gmra.mrb[0].mxu0 %v717
      %v719 = vpop.f32.mrb[0].mxu0
      %v720 = vadd.f32 %v521, %v719
      %v721 = vpop.f32.mrb[0].mxu0
      %722 = vmatprep.mubr.f32.mxu0 0.0
      %v723 = vand.u32 %v29, 4294901760
      %v724 = vsub.f32 %v29, %v723
      %725 = vmatmul.mubr.f32.gmra.mrb[0].mxu0 %v724
      %v726 = vpop.f32.mrb[0].mxu0
      %v727 = vadd.f32 %v527, %v726
      %v728 = vpop.f32.mrb[0].mxu0
      %729 = vmatprep.mubr.f32.mxu0 0.0
      %v730 = vand.u32 %v30, 4294901760
      %v731 = vsub.f32 %v30, %v730
      %732 = vmatmul.mubr.f32.gmra.mrb[0].mxu0 %v731
      %v733 = vpop.f32.mrb[0].mxu0
      %v734 = vadd.f32 %v533, %v733
      %v735 = vpop.f32.mrb[0].mxu0
      %736 = vmatprep.mubr.f32.mxu0 0.0
      %v737 = vand.u32 %v31, 4294901760
      %v738 = vsub.f32 %v31, %v737
      %739 = vmatmul.mubr.f32.gmra.mrb[0].mxu0 %v738
      %v740 = vpop.f32.mrb[0].mxu0
      %v741 = vadd.f32 %v539, %v740
      %v742 = vpop.f32.mrb[0].mxu0
      %743 = vmatprep.mubr.f32.mxu0 0.0
      %v744 = vand.u32 %v32, 4294901760
      %v745 = vsub.f32 %v32, %v744
      %746 = vmatmul.mubr.f32.gmra.mrb[0].mxu0 %v745
      %v747 = vpop.f32.mrb[0].mxu0
      %v748 = vadd.f32 %v545, %v747
      %v749 = vpop.f32.mrb[0].mxu0
      %750 = vmatprep.mubr.f32.mxu0 0.0
      %v751 = vand.u32 %v33, 4294901760
      %v752 = vsub.f32 %v33, %v751
      %753 = vmatmul.mubr.f32.gmra.mrb[0].mxu0 %v752
      %v754 = vpop.f32.mrb[0].mxu0
      %v755 = vadd.f32 %v551, %v754
      %v756 = vpop.f32.mrb[0].mxu0
      %757 = vmatprep.mubr.f32.mxu0 0.0
      %v758 = vand.u32 %v34, 4294901760
      %v759 = vsub.f32 %v34, %v758
      %760 = vmatmul.mubr.f32.gmra.mrb[0].mxu0 %v759
      %v761 = vpop.f32.mrb[0].mxu0
      %v762 = vadd.f32 %v557, %v761
      %v763 = vpop.f32.mrb[0].mxu0
      %764 = vmatprep.mubr.f32.mxu0 0.0
      %v765 = vand.u32 %v35, 4294901760
      %v766 = vsub.f32 %v35, %v765
      %767 = vmatmul.mubr.f32.gmra.mrb[0].mxu0 %v766
      %v768 = vpop.f32.mrb[0].mxu0
      %v769 = vadd.f32 %v563, %v768
      %v770 = vpop.f32.mrb[0].mxu0
      %771 = vmatprep.mubr.f32.mxu0 0.0
      %v772 = vand.u32 %v36, 4294901760
      %v773 = vsub.f32 %v36, %v772
      %774 = vmatmul.mubr.f32.gmra.mrb[0].mxu0 %v773
      %v775 = vpop.f32.mrb[0].mxu0
      %v776 = vadd.f32 %v569, %v775
      %v777 = vpop.f32.mrb[0].mxu0
      %778 = vmatprep.mubr.f32.mxu0 0.0
      %v779 = vand.u32 %v37, 4294901760
      %v780 = vsub.f32 %v37, %v779
      %781 = vmatmul.mubr.f32.gmra.mrb[0].mxu0 %v780
      %v782 = vpop.f32.mrb[0].mxu0
      %v783 = vadd.f32 %v575, %v782
      %v784 = vpop.f32.mrb[0].mxu0
      %785 = vmatprep.mubr.f32.mxu0 0.0
      %v786 = vand.u32 %v38, 4294901760
      %v787 = vsub.f32 %v38, %v786
      %788 = vmatmul.mubr.f32.gmra.mrb[0].mxu0 %v787
      %v789 = vpop.f32.mrb[0].mxu0
      %v790 = vadd.f32 %v581, %v789
      %v791 = vpop.f32.mrb[0].mxu0
      %792 = vdwg.mxu0
      %793 = vmatprep.subr.mxu0 0.0
      %v794 = vand.u32 %v23, 4294901760
      %795 = vmatpush1.msra.mxu0 %v794
      %796 = vmatprep.subr.mxu0 0.0
      %v797 = vand.u32 %v24, 4294901760
      %798 = vmatpush1.msra.mxu0 %v797
      %799 = vmatprep.subr.mxu0 0.0
      %v800 = vand.u32 %v25, 4294901760
      %801 = vmatpush1.msra.mxu0 %v800
      %802 = vmatprep.subr.mxu0 0.0
      %v803 = vand.u32 %v26, 4294901760
      %804 = vmatpush1.msra.mxu0 %v803
      %805 = vmatprep.subr.mxu0 0.0
      %v806 = vand.u32 %v27, 4294901760
      %807 = vmatpush1.msra.mxu0 %v806
      %808 = vmatprep.subr.mxu0 0.0
      %v809 = vand.u32 %v28, 4294901760
      %810 = vmatpush1.msra.mxu0 %v809
      %811 = vmatprep.subr.mxu0 0.0
      %v812 = vand.u32 %v29, 4294901760
      %813 = vmatpush1.msra.mxu0 %v812
      %814 = vmatprep.subr.mxu0 0.0
      %v815 = vand.u32 %v30, 4294901760
      %816 = vmatpush1.msra.mxu0 %v815
      %817 = vmatprep.subr.mxu0 0.0
      %v818 = vand.u32 %v31, 4294901760
      %819 = vmatpush1.msra.mxu0 %v818
      %820 = vmatprep.subr.mxu0 0.0
      %v821 = vand.u32 %v32, 4294901760
      %822 = vmatpush1.msra.mxu0 %v821
      %823 = vmatprep.subr.mxu0 0.0
      %v824 = vand.u32 %v33, 4294901760
      %825 = vmatpush1.msra.mxu0 %v824
      %826 = vmatprep.subr.mxu0 0.0
      %v827 = vand.u32 %v34, 4294901760
      %828 = vmatpush1.msra.mxu0 %v827
      %829 = vmatprep.subr.mxu0 0.0
      %v830 = vand.u32 %v35, 4294901760
      %831 = vmatpush1.msra.mxu0 %v830
      %832 = vmatprep.subr.mxu0 0.0
      %v833 = vand.u32 %v36, 4294901760
      %834 = vmatpush1.msra.mxu0 %v833
      %835 = vmatprep.subr.mxu0 0.0
      %v836 = vand.u32 %v37, 4294901760
      %837 = vmatpush1.msra.mxu0 %v836
      %838 = vmatprep.subr.mxu0 0.0
      %v839 = vand.u32 %v38, 4294901760
      %840 = vmatpush1.msra.mxu0 %v839
      %841 = vmatprep.subr.mxu0 0.0
      %842 = vmatpush1.msra.mxu0 0.0
      %843 = vmatprep.subr.mxu0 0.0
      %844 = vmatpush1.msra.mxu0 0.0
      %845 = vmatprep.subr.mxu0 0.0
      %846 = vmatpush1.msra.mxu0 0.0
      %847 = vmatprep.subr.mxu0 0.0
      %848 = vmatpush1.msra.mxu0 0.0
      %849 = vmatprep.subr.mxu0 0.0
      %850 = vmatpush1.msra.mxu0 0.0
      %851 = vmatprep.subr.mxu0 0.0
      %852 = vmatpush1.msra.mxu0 0.0
      %853 = vmatprep.subr.mxu0 0.0
      %854 = vmatpush1.msra.mxu0 0.0
      %855 = vmatprep.subr.mxu0 0.0
      %856 = vmatpush1.msra.mxu0 0.0
      %857 = vmatprep.subr.mxu0 0.0
      %858 = vmatpush1.msra.mxu0 0.0
      %859 = vmatprep.subr.mxu0 0.0
      %860 = vmatpush1.msra.mxu0 0.0
      %861 = vmatprep.subr.mxu0 0.0
      %862 = vmatpush1.msra.mxu0 0.0
      %863 = vmatprep.subr.mxu0 0.0
      %864 = vmatpush1.msra.mxu0 0.0
      %865 = vmatprep.subr.mxu0 0.0
      %866 = vmatpush1.msra.mxu0 0.0
      %867 = vmatprep.subr.mxu0 0.0
      %868 = vmatpush1.msra.mxu0 0.0
      %869 = vmatprep.subr.mxu0 0.0
      %870 = vmatpush1.msra.mxu0 0.0
      %871 = vmatprep.subr.mxu0 0.0
      %872 = vmatpush1.msra.mxu0 0.0
      %873 = vmatprep.mubr.f32.mxu0 0.0
      %v874 = vand.u32 %v23, 4294901760
      %v875 = vsub.f32 %v23, %v874
      %v876 = vand.u32 %v875, 4294901760
      %877 = vmatmul.mubr.f32.gmra.mrb[0].mxu0 %v876
      %v878 = vpop.f32.mrb[0].mxu0
      %v879 = vadd.f32 %v685, %v878
      %v880 = vpop.f32.mrb[0].mxu0
      %881 = vmatprep.mubr.f32.mxu0 0.0
      %v882 = vand.u32 %v24, 4294901760
      %v883 = vsub.f32 %v24, %v882
      %v884 = vand.u32 %v883, 4294901760
      %885 = vmatmul.mubr.f32.gmra.mrb[0].mxu0 %v884
      %v886 = vpop.f32.mrb[0].mxu0
      %v887 = vadd.f32 %v692, %v886
      %v888 = vpop.f32.mrb[0].mxu0
      %889 = vmatprep.mubr.f32.mxu0 0.0
      %v890 = vand.u32 %v25, 4294901760
      %v891 = vsub.f32 %v25, %v890
      %v892 = vand.u32 %v891, 4294901760
      %893 = vmatmul.mubr.f32.gmra.mrb[0].mxu0 %v892
      %v894 = vpop.f32.mrb[0].mxu0
      %v895 = vadd.f32 %v699, %v894
      %v896 = vpop.f32.mrb[0].mxu0
      %897 = vmatprep.mubr.f32.mxu0 0.0
      %v898 = vand.u32 %v26, 4294901760
      %v899 = vsub.f32 %v26, %v898
      %v900 = vand.u32 %v899, 4294901760
      %901 = vmatmul.mubr.f32.gmra.mrb[0].mxu0 %v900
      %v902 = vpop.f32.mrb[0].mxu0
      %v903 = vadd.f32 %v706, %v902
      %v904 = vpop.f32.mrb[0].mxu0
      %905 = vmatprep.mubr.f32.mxu0 0.0
      %v906 = vand.u32 %v27, 4294901760
      %v907 = vsub.f32 %v27, %v906
      %v908 = vand.u32 %v907, 4294901760
      %909 = vmatmul.mubr.f32.gmra.mrb[0].mxu0 %v908
      %v910 = vpop.f32.mrb[0].mxu0
      %v911 = vadd.f32 %v713, %v910
      %v912 = vpop.f32.mrb[0].mxu0
      %913 = vmatprep.mubr.f32.mxu0 0.0
      %v914 = vand.u32 %v28, 4294901760
      %v915 = vsub.f32 %v28, %v914
      %v916 = vand.u32 %v915, 4294901760
      %917 = vmatmul.mubr.f32.gmra.mrb[0].mxu0 %v916
      %v918 = vpop.f32.mrb[0].mxu0
      %v919 = vadd.f32 %v720, %v918
      %v920 = vpop.f32.mrb[0].mxu0
      %921 = vmatprep.mubr.f32.mxu0 0.0
      %v922 = vand.u32 %v29, 4294901760
      %v923 = vsub.f32 %v29, %v922
      %v924 = vand.u32 %v923, 4294901760
      %925 = vmatmul.mubr.f32.gmra.mrb[0].mxu0 %v924
      %v926 = vpop.f32.mrb[0].mxu0
      %v927 = vadd.f32 %v727, %v926
      %v928 = vpop.f32.mrb[0].mxu0
      %929 = vmatprep.mubr.f32.mxu0 0.0
      %v930 = vand.u32 %v30, 4294901760
      %v931 = vsub.f32 %v30, %v930
      %v932 = vand.u32 %v931, 4294901760
      %933 = vmatmul.mubr.f32.gmra.mrb[0].mxu0 %v932
      %v934 = vpop.f32.mrb[0].mxu0
      %v935 = vadd.f32 %v734, %v934
      %v936 = vpop.f32.mrb[0].mxu0
      %937 = vmatprep.mubr.f32.mxu0 0.0
      %v938 = vand.u32 %v31, 4294901760
      %v939 = vsub.f32 %v31, %v938
      %v940 = vand.u32 %v939, 4294901760
      %941 = vmatmul.mubr.f32.gmra.mrb[0].mxu0 %v940
      %v942 = vpop.f32.mrb[0].mxu0
      %v943 = vadd.f32 %v741, %v942
      %v944 = vpop.f32.mrb[0].mxu0
      %945 = vmatprep.mubr.f32.mxu0 0.0
      %v946 = vand.u32 %v32, 4294901760
      %v947 = vsub.f32 %v32, %v946
      %v948 = vand.u32 %v947, 4294901760
      %949 = vmatmul.mubr.f32.gmra.mrb[0].mxu0 %v948
      %v950 = vpop.f32.mrb[0].mxu0
      %v951 = vadd.f32 %v748, %v950
      %v952 = vpop.f32.mrb[0].mxu0
      %953 = vmatprep.mubr.f32.mxu0 0.0
      %v954 = vand.u32 %v33, 4294901760
      %v955 = vsub.f32 %v33, %v954
      %v956 = vand.u32 %v955, 4294901760
      %957 = vmatmul.mubr.f32.gmra.mrb[0].mxu0 %v956
      %v958 = vpop.f32.mrb[0].mxu0
      %v959 = vadd.f32 %v755, %v958
      %v960 = vpop.f32.mrb[0].mxu0
      %961 = vmatprep.mubr.f32.mxu0 0.0
      %v962 = vand.u32 %v34, 4294901760
      %v963 = vsub.f32 %v34, %v962
      %v964 = vand.u32 %v963, 4294901760
      %965 = vmatmul.mubr.f32.gmra.mrb[0].mxu0 %v964
      %v966 = vpop.f32.mrb[0].mxu0
      %v967 = vadd.f32 %v762, %v966
      %v968 = vpop.f32.mrb[0].mxu0
      %969 = vmatprep.mubr.f32.mxu0 0.0
      %v970 = vand.u32 %v35, 4294901760
      %v971 = vsub.f32 %v35, %v970
      %v972 = vand.u32 %v971, 4294901760
      %973 = vmatmul.mubr.f32.gmra.mrb[0].mxu0 %v972
      %v974 = vpop.f32.mrb[0].mxu0
      %v975 = vadd.f32 %v769, %v974
      %v976 = vpop.f32.mrb[0].mxu0
      %977 = vmatprep.mubr.f32.mxu0 0.0
      %v978 = vand.u32 %v36, 4294901760
      %v979 = vsub.f32 %v36, %v978
      %v980 = vand.u32 %v979, 4294901760
      %981 = vmatmul.mubr.f32.gmra.mrb[0].mxu0 %v980
      %v982 = vpop.f32.mrb[0].mxu0
      %v983 = vadd.f32 %v776, %v982
      %v984 = vpop.f32.mrb[0].mxu0
      %985 = vmatprep.mubr.f32.mxu0 0.0
      %v986 = vand.u32 %v37, 4294901760
      %v987 = vsub.f32 %v37, %v986
      %v988 = vand.u32 %v987, 4294901760
      %989 = vmatmul.mubr.f32.gmra.mrb[0].mxu0 %v988
      %v990 = vpop.f32.mrb[0].mxu0
      %v991 = vadd.f32 %v783, %v990
      %v992 = vpop.f32.mrb[0].mxu0
      %993 = vmatprep.mubr.f32.mxu0 0.0
      %v994 = vand.u32 %v38, 4294901760
      %v995 = vsub.f32 %v38, %v994
      %v996 = vand.u32 %v995, 4294901760
      %997 = vmatmul.mubr.f32.gmra.mrb[0].mxu0 %v996
      %v998 = vpop.f32.mrb[0].mxu0
      %v999 = vadd.f32 %v790, %v998
      %v1000 = vpop.f32.mrb[0].mxu0
      %1001 = vdwg.mxu0
      %1002 = vmatprep.subr.mxu0 0.0
      %v1003 = vand.u32 %v23, 4294901760
      %v1004 = vsub.f32 %v23, %v1003
      %v1005 = vand.u32 %v1004, 4294901760
      %1006 = vmatpush1.msra.mxu0 %v1005
      %1007 = vmatprep.subr.mxu0 0.0
      %v1008 = vand.u32 %v24, 4294901760
      %v1009 = vsub.f32 %v24, %v1008
      %v1010 = vand.u32 %v1009, 4294901760
      %1011 = vmatpush1.msra.mxu0 %v1010
      %1012 = vmatprep.subr.mxu0 0.0
      %v1013 = vand.u32 %v25, 4294901760
      %v1014 = vsub.f32 %v25, %v1013
      %v1015 = vand.u32 %v1014, 4294901760
      %1016 = vmatpush1.msra.mxu0 %v1015
      %1017 = vmatprep.subr.mxu0 0.0
      %v1018 = vand.u32 %v26, 4294901760
      %v1019 = vsub.f32 %v26, %v1018
      %v1020 = vand.u32 %v1019, 4294901760
      %1021 = vmatpush1.msra.mxu0 %v1020
      %1022 = vmatprep.subr.mxu0 0.0
      %v1023 = vand.u32 %v27, 4294901760
      %v1024 = vsub.f32 %v27, %v1023
      %v1025 = vand.u32 %v1024, 4294901760
      %1026 = vmatpush1.msra.mxu0 %v1025
      %1027 = vmatprep.subr.mxu0 0.0
      %v1028 = vand.u32 %v28, 4294901760
      %v1029 = vsub.f32 %v28, %v1028
      %v1030 = vand.u32 %v1029, 4294901760
      %1031 = vmatpush1.msra.mxu0 %v1030
      %1032 = vmatprep.subr.mxu0 0.0
      %v1033 = vand.u32 %v29, 4294901760
      %v1034 = vsub.f32 %v29, %v1033
      %v1035 = vand.u32 %v1034, 4294901760
      %1036 = vmatpush1.msra.mxu0 %v1035
      %1037 = vmatprep.subr.mxu0 0.0
      %v1038 = vand.u32 %v30, 4294901760
      %v1039 = vsub.f32 %v30, %v1038
      %v1040 = vand.u32 %v1039, 4294901760
      %1041 = vmatpush1.msra.mxu0 %v1040
      %1042 = vmatprep.subr.mxu0 0.0
      %v1043 = vand.u32 %v31, 4294901760
      %v1044 = vsub.f32 %v31, %v1043
      %v1045 = vand.u32 %v1044, 4294901760
      %1046 = vmatpush1.msra.mxu0 %v1045
      %1047 = vmatprep.subr.mxu0 0.0
      %v1048 = vand.u32 %v32, 4294901760
      %v1049 = vsub.f32 %v32, %v1048
      %v1050 = vand.u32 %v1049, 4294901760
      %1051 = vmatpush1.msra.mxu0 %v1050
      %1052 = vmatprep.subr.mxu0 0.0
      %v1053 = vand.u32 %v33, 4294901760
      %v1054 = vsub.f32 %v33, %v1053
      %v1055 = vand.u32 %v1054, 4294901760
      %1056 = vmatpush1.msra.mxu0 %v1055
      %1057 = vmatprep.subr.mxu0 0.0
      %v1058 = vand.u32 %v34, 4294901760
      %v1059 = vsub.f32 %v34, %v1058
      %v1060 = vand.u32 %v1059, 4294901760
      %1061 = vmatpush1.msra.mxu0 %v1060
      %1062 = vmatprep.subr.mxu0 0.0
      %v1063 = vand.u32 %v35, 4294901760
      %v1064 = vsub.f32 %v35, %v1063
      %v1065 = vand.u32 %v1064, 4294901760
      %1066 = vmatpush1.msra.mxu0 %v1065
      %1067 = vmatprep.subr.mxu0 0.0
      %v1068 = vand.u32 %v36, 4294901760
      %v1069 = vsub.f32 %v36, %v1068
      %v1070 = vand.u32 %v1069, 4294901760
      %1071 = vmatpush1.msra.mxu0 %v1070
      %1072 = vmatprep.subr.mxu0 0.0
      %v1073 = vand.u32 %v37, 4294901760
      %v1074 = vsub.f32 %v37, %v1073
      %v1075 = vand.u32 %v1074, 4294901760
      %1076 = vmatpush1.msra.mxu0 %v1075
      %1077 = vmatprep.subr.mxu0 0.0
      %v1078 = vand.u32 %v38, 4294901760
      %v1079 = vsub.f32 %v38, %v1078
      %v1080 = vand.u32 %v1079, 4294901760
      %1081 = vmatpush1.msra.mxu0 %v1080
      %1082 = vmatprep.subr.mxu0 0.0
      %1083 = vmatpush1.msra.mxu0 0.0
      %1084 = vmatprep.subr.mxu0 0.0
      %1085 = vmatpush1.msra.mxu0 0.0
      %1086 = vmatprep.subr.mxu0 0.0
      %1087 = vmatpush1.msra.mxu0 0.0
      %1088 = vmatprep.subr.mxu0 0.0
      %1089 = vmatpush1.msra.mxu0 0.0
      %1090 = vmatprep.subr.mxu0 0.0
      %1091 = vmatpush1.msra.mxu0 0.0
      %1092 = vmatprep.subr.mxu0 0.0
      %1093 = vmatpush1.msra.mxu0 0.0
      %1094 = vmatprep.subr.mxu0 0.0
      %1095 = vmatpush1.msra.mxu0 0.0
      %1096 = vmatprep.subr.mxu0 0.0
      %1097 = vmatpush1.msra.mxu0 0.0
      %1098 = vmatprep.subr.mxu0 0.0
      %1099 = vmatpush1.msra.mxu0 0.0
      %1100 = vmatprep.subr.mxu0 0.0
      %1101 = vmatpush1.msra.mxu0 0.0
      %1102 = vmatprep.subr.mxu0 0.0
      %1103 = vmatpush1.msra.mxu0 0.0
      %1104 = vmatprep.subr.mxu0 0.0
      %1105 = vmatpush1.msra.mxu0 0.0
      %1106 = vmatprep.subr.mxu0 0.0
      %1107 = vmatpush1.msra.mxu0 0.0
      %1108 = vmatprep.subr.mxu0 0.0
      %1109 = vmatpush1.msra.mxu0 0.0
      %1110 = vmatprep.subr.mxu0 0.0
      %1111 = vmatpush1.msra.mxu0 0.0
      %1112 = vmatprep.subr.mxu0 0.0
      %1113 = vmatpush1.msra.mxu0 0.0
      %1114 = vmatprep.mubr.f32.mxu0 0.0
      %v1115 = vand.u32 %v23, 4294901760
      %1116 = vmatmul.mubr.f32.gmra.mrb[0].mxu0 %v1115
      %v1117 = vpop.f32.mrb[0].mxu0
      %v1118 = vadd.f32 %v879, %v1117
      %v1119 = vpop.f32.mrb[0].mxu0
      %1120 = vmatprep.mubr.f32.mxu0 0.0
      %v1121 = vand.u32 %v24, 4294901760
      %1122 = vmatmul.mubr.f32.gmra.mrb[0].mxu0 %v1121
      %v1123 = vpop.f32.mrb[0].mxu0
      %v1124 = vadd.f32 %v887, %v1123
      %v1125 = vpop.f32.mrb[0].mxu0
      %1126 = vmatprep.mubr.f32.mxu0 0.0
      %v1127 = vand.u32 %v25, 4294901760
      %1128 = vmatmul.mubr.f32.gmra.mrb[0].mxu0 %v1127
      %v1129 = vpop.f32.mrb[0].mxu0
      %v1130 = vadd.f32 %v895, %v1129
      %v1131 = vpop.f32.mrb[0].mxu0
      %1132 = vmatprep.mubr.f32.mxu0 0.0
      %v1133 = vand.u32 %v26, 4294901760
      %1134 = vmatmul.mubr.f32.gmra.mrb[0].mxu0 %v1133
      %v1135 = vpop.f32.mrb[0].mxu0
      %v1136 = vadd.f32 %v903, %v1135
      %v1137 = vpop.f32.mrb[0].mxu0
      %1138 = vmatprep.mubr.f32.mxu0 0.0
      %v1139 = vand.u32 %v27, 4294901760
      %1140 = vmatmul.mubr.f32.gmra.mrb[0].mxu0 %v1139
      %v1141 = vpop.f32.mrb[0].mxu0
      %v1142 = vadd.f32 %v911, %v1141
      %v1143 = vpop.f32.mrb[0].mxu0
      %1144 = vmatprep.mubr.f32.mxu0 0.0
      %v1145 = vand.u32 %v28, 4294901760
      %1146 = vmatmul.mubr.f32.gmra.mrb[0].mxu0 %v1145
      %v1147 = vpop.f32.mrb[0].mxu0
      %v1148 = vadd.f32 %v919, %v1147
      %v1149 = vpop.f32.mrb[0].mxu0
      %1150 = vmatprep.mubr.f32.mxu0 0.0
      %v1151 = vand.u32 %v29, 4294901760
      %1152 = vmatmul.mubr.f32.gmra.mrb[0].mxu0 %v1151
      %v1153 = vpop.f32.mrb[0].mxu0
      %v1154 = vadd.f32 %v927, %v1153
      %v1155 = vpop.f32.mrb[0].mxu0
      %1156 = vmatprep.mubr.f32.mxu0 0.0
      %v1157 = vand.u32 %v30, 4294901760
      %1158 = vmatmul.mubr.f32.gmra.mrb[0].mxu0 %v1157
      %v1159 = vpop.f32.mrb[0].mxu0
      %v1160 = vadd.f32 %v935, %v1159
      %v1161 = vpop.f32.mrb[0].mxu0
      %1162 = vmatprep.mubr.f32.mxu0 0.0
      %v1163 = vand.u32 %v31, 4294901760
      %1164 = vmatmul.mubr.f32.gmra.mrb[0].mxu0 %v1163
      %v1165 = vpop.f32.mrb[0].mxu0
      %v1166 = vadd.f32 %v943, %v1165
      %v1167 = vpop.f32.mrb[0].mxu0
      %1168 = vmatprep.mubr.f32.mxu0 0.0
      %v1169 = vand.u32 %v32, 4294901760
      %1170 = vmatmul.mubr.f32.gmra.mrb[0].mxu0 %v1169
      %v1171 = vpop.f32.mrb[0].mxu0
      %v1172 = vadd.f32 %v951, %v1171
      %v1173 = vpop.f32.mrb[0].mxu0
      %1174 = vmatprep.mubr.f32.mxu0 0.0
      %v1175 = vand.u32 %v33, 4294901760
      %1176 = vmatmul.mubr.f32.gmra.mrb[0].mxu0 %v1175
      %v1177 = vpop.f32.mrb[0].mxu0
      %v1178 = vadd.f32 %v959, %v1177
      %v1179 = vpop.f32.mrb[0].mxu0
      %1180 = vmatprep.mubr.f32.mxu0 0.0
      %v1181 = vand.u32 %v34, 4294901760
      %1182 = vmatmul.mubr.f32.gmra.mrb[0].mxu0 %v1181
      %v1183 = vpop.f32.mrb[0].mxu0
      %v1184 = vadd.f32 %v967, %v1183
      %v1185 = vpop.f32.mrb[0].mxu0
      %1186 = vmatprep.mubr.f32.mxu0 0.0
      %v1187 = vand.u32 %v35, 4294901760
      %1188 = vmatmul.mubr.f32.gmra.mrb[0].mxu0 %v1187
      %v1189 = vpop.f32.mrb[0].mxu0
      %v1190 = vadd.f32 %v975, %v1189
      %v1191 = vpop.f32.mrb[0].mxu0
      %1192 = vmatprep.mubr.f32.mxu0 0.0
      %v1193 = vand.u32 %v36, 4294901760
      %1194 = vmatmul.mubr.f32.gmra.mrb[0].mxu0 %v1193
      %v1195 = vpop.f32.mrb[0].mxu0
      %v1196 = vadd.f32 %v983, %v1195
      %v1197 = vpop.f32.mrb[0].mxu0
      %1198 = vmatprep.mubr.f32.mxu0 0.0
      %v1199 = vand.u32 %v37, 4294901760
      %1200 = vmatmul.mubr.f32.gmra.mrb[0].mxu0 %v1199
      %v1201 = vpop.f32.mrb[0].mxu0
      %v1202 = vadd.f32 %v991, %v1201
      %v1203 = vpop.f32.mrb[0].mxu0
      %1204 = vmatprep.mubr.f32.mxu0 0.0
      %v1205 = vand.u32 %v38, 4294901760
      %1206 = vmatmul.mubr.f32.gmra.mrb[0].mxu0 %v1205
      %v1207 = vpop.f32.mrb[0].mxu0
      %v1208 = vadd.f32 %v999, %v1207
      %v1209 = vpop.f32.mrb[0].mxu0
      %1210 = vdwg.mxu0
      %1211 = vmatprep.subr.mxu0 0.0
      %v1212 = vand.u32 %v23, 4294901760
      %1213 = vmatpush1.msra.mxu0 %v1212
      %1214 = vmatprep.subr.mxu0 0.0
      %v1215 = vand.u32 %v24, 4294901760
      %1216 = vmatpush1.msra.mxu0 %v1215
      %1217 = vmatprep.subr.mxu0 0.0
      %v1218 = vand.u32 %v25, 4294901760
      %1219 = vmatpush1.msra.mxu0 %v1218
      %1220 = vmatprep.subr.mxu0 0.0
      %v1221 = vand.u32 %v26, 4294901760
      %1222 = vmatpush1.msra.mxu0 %v1221
      %1223 = vmatprep.subr.mxu0 0.0
      %v1224 = vand.u32 %v27, 4294901760
      %1225 = vmatpush1.msra.mxu0 %v1224
      %1226 = vmatprep.subr.mxu0 0.0
      %v1227 = vand.u32 %v28, 4294901760
      %1228 = vmatpush1.msra.mxu0 %v1227
      %1229 = vmatprep.subr.mxu0 0.0
      %v1230 = vand.u32 %v29, 4294901760
      %1231 = vmatpush1.msra.mxu0 %v1230
      %1232 = vmatprep.subr.mxu0 0.0
      %v1233 = vand.u32 %v30, 4294901760
      %1234 = vmatpush1.msra.mxu0 %v1233
      %1235 = vmatprep.subr.mxu0 0.0
      %v1236 = vand.u32 %v31, 4294901760
      %1237 = vmatpush1.msra.mxu0 %v1236
      %1238 = vmatprep.subr.mxu0 0.0
      %v1239 = vand.u32 %v32, 4294901760
      %1240 = vmatpush1.msra.mxu0 %v1239
      %1241 = vmatprep.subr.mxu0 0.0
      %v1242 = vand.u32 %v33, 4294901760
      %1243 = vmatpush1.msra.mxu0 %v1242
      %1244 = vmatprep.subr.mxu0 0.0
      %v1245 = vand.u32 %v34, 4294901760
      %1246 = vmatpush1.msra.mxu0 %v1245
      %1247 = vmatprep.subr.mxu0 0.0
      %v1248 = vand.u32 %v35, 4294901760
      %1249 = vmatpush1.msra.mxu0 %v1248
      %1250 = vmatprep.subr.mxu0 0.0
      %v1251 = vand.u32 %v36, 4294901760
      %1252 = vmatpush1.msra.mxu0 %v1251
      %1253 = vmatprep.subr.mxu0 0.0
      %v1254 = vand.u32 %v37, 4294901760
      %1255 = vmatpush1.msra.mxu0 %v1254
      %1256 = vmatprep.subr.mxu0 0.0
      %v1257 = vand.u32 %v38, 4294901760
      %1258 = vmatpush1.msra.mxu0 %v1257
      %1259 = vmatprep.subr.mxu0 0.0
      %1260 = vmatpush1.msra.mxu0 0.0
      %1261 = vmatprep.subr.mxu0 0.0
      %1262 = vmatpush1.msra.mxu0 0.0
      %1263 = vmatprep.subr.mxu0 0.0
      %1264 = vmatpush1.msra.mxu0 0.0
      %1265 = vmatprep.subr.mxu0 0.0
      %1266 = vmatpush1.msra.mxu0 0.0
      %1267 = vmatprep.subr.mxu0 0.0
      %1268 = vmatpush1.msra.mxu0 0.0
      %1269 = vmatprep.subr.mxu0 0.0
      %1270 = vmatpush1.msra.mxu0 0.0
      %1271 = vmatprep.subr.mxu0 0.0
      %1272 = vmatpush1.msra.mxu0 0.0
      %1273 = vmatprep.subr.mxu0 0.0
      %1274 = vmatpush1.msra.mxu0 0.0
      %1275 = vmatprep.subr.mxu0 0.0
      %1276 = vmatpush1.msra.mxu0 0.0
      %1277 = vmatprep.subr.mxu0 0.0
      %1278 = vmatpush1.msra.mxu0 0.0
      %1279 = vmatprep.subr.mxu0 0.0
      %1280 = vmatpush1.msra.mxu0 0.0
      %1281 = vmatprep.subr.mxu0 0.0
      %1282 = vmatpush1.msra.mxu0 0.0
      %1283 = vmatprep.subr.mxu0 0.0
      %1284 = vmatpush1.msra.mxu0 0.0
      %1285 = vmatprep.subr.mxu0 0.0
      %1286 = vmatpush1.msra.mxu0 0.0
      %1287 = vmatprep.subr.mxu0 0.0
      %1288 = vmatpush1.msra.mxu0 0.0
      %1289 = vmatprep.subr.mxu0 0.0
      %1290 = vmatpush1.msra.mxu0 0.0
      %1291 = vmatprep.mubr.f32.mxu0 0.0
      %v1292 = vand.u32 %v23, 4294901760
      %1293 = vmatmul.mubr.f32.gmra.mrb[0].mxu0 %v1292
      %v1294 = vpop.f32.mrb[0].mxu0
      %v1295 = vadd.f32 %v1118, %v1294
      %v1296 = vpop.f32.mrb[0].mxu0
      %1297 = vmatprep.mubr.f32.mxu0 0.0
      %v1298 = vand.u32 %v24, 4294901760
      %1299 = vmatmul.mubr.f32.gmra.mrb[0].mxu0 %v1298
      %v1300 = vpop.f32.mrb[0].mxu0
      %v1301 = vadd.f32 %v1124, %v1300
      %v1302 = vpop.f32.mrb[0].mxu0
      %1303 = vmatprep.mubr.f32.mxu0 0.0
      %v1304 = vand.u32 %v25, 4294901760
      %1305 = vmatmul.mubr.f32.gmra.mrb[0].mxu0 %v1304
      %v1306 = vpop.f32.mrb[0].mxu0
      %v1307 = vadd.f32 %v1130, %v1306
      %v1308 = vpop.f32.mrb[0].mxu0
      %1309 = vmatprep.mubr.f32.mxu0 0.0
      %v1310 = vand.u32 %v26, 4294901760
      %1311 = vmatmul.mubr.f32.gmra.mrb[0].mxu0 %v1310
      %v1312 = vpop.f32.mrb[0].mxu0
      %v1313 = vadd.f32 %v1136, %v1312
      %v1314 = vpop.f32.mrb[0].mxu0
      %1315 = vmatprep.mubr.f32.mxu0 0.0
      %v1316 = vand.u32 %v27, 4294901760
      %1317 = vmatmul.mubr.f32.gmra.mrb[0].mxu0 %v1316
      %v1318 = vpop.f32.mrb[0].mxu0
      %v1319 = vadd.f32 %v1142, %v1318
      %v1320 = vpop.f32.mrb[0].mxu0
      %1321 = vmatprep.mubr.f32.mxu0 0.0
      %v1322 = vand.u32 %v28, 4294901760
      %1323 = vmatmul.mubr.f32.gmra.mrb[0].mxu0 %v1322
      %v1324 = vpop.f32.mrb[0].mxu0
      %v1325 = vadd.f32 %v1148, %v1324
      %v1326 = vpop.f32.mrb[0].mxu0
      %1327 = vmatprep.mubr.f32.mxu0 0.0
      %v1328 = vand.u32 %v29, 4294901760
      %1329 = vmatmul.mubr.f32.gmra.mrb[0].mxu0 %v1328
      %v1330 = vpop.f32.mrb[0].mxu0
      %v1331 = vadd.f32 %v1154, %v1330
      %v1332 = vpop.f32.mrb[0].mxu0
      %1333 = vmatprep.mubr.f32.mxu0 0.0
      %v1334 = vand.u32 %v30, 4294901760
      %1335 = vmatmul.mubr.f32.gmra.mrb[0].mxu0 %v1334
      %v1336 = vpop.f32.mrb[0].mxu0
      %v1337 = vadd.f32 %v1160, %v1336
      %v1338 = vpop.f32.mrb[0].mxu0
      %1339 = vmatprep.mubr.f32.mxu0 0.0
      %v1340 = vand.u32 %v31, 4294901760
      %1341 = vmatmul.mubr.f32.gmra.mrb[0].mxu0 %v1340
      %v1342 = vpop.f32.mrb[0].mxu0
      %v1343 = vadd.f32 %v1166, %v1342
      %v1344 = vpop.f32.mrb[0].mxu0
      %1345 = vmatprep.mubr.f32.mxu0 0.0
      %v1346 = vand.u32 %v32, 4294901760
      %1347 = vmatmul.mubr.f32.gmra.mrb[0].mxu0 %v1346
      %v1348 = vpop.f32.mrb[0].mxu0
      %v1349 = vadd.f32 %v1172, %v1348
      %v1350 = vpop.f32.mrb[0].mxu0
      %1351 = vmatprep.mubr.f32.mxu0 0.0
      %v1352 = vand.u32 %v33, 4294901760
      %1353 = vmatmul.mubr.f32.gmra.mrb[0].mxu0 %v1352
      %v1354 = vpop.f32.mrb[0].mxu0
      %v1355 = vadd.f32 %v1178, %v1354
      %v1356 = vpop.f32.mrb[0].mxu0
      %1357 = vmatprep.mubr.f32.mxu0 0.0
      %v1358 = vand.u32 %v34, 4294901760
      %1359 = vmatmul.mubr.f32.gmra.mrb[0].mxu0 %v1358
      %v1360 = vpop.f32.mrb[0].mxu0
      %v1361 = vadd.f32 %v1184, %v1360
      %v1362 = vpop.f32.mrb[0].mxu0
      %1363 = vmatprep.mubr.f32.mxu0 0.0
      %v1364 = vand.u32 %v35, 4294901760
      %1365 = vmatmul.mubr.f32.gmra.mrb[0].mxu0 %v1364
      %v1366 = vpop.f32.mrb[0].mxu0
      %v1367 = vadd.f32 %v1190, %v1366
      %v1368 = vpop.f32.mrb[0].mxu0
      %1369 = vmatprep.mubr.f32.mxu0 0.0
      %v1370 = vand.u32 %v36, 4294901760
      %1371 = vmatmul.mubr.f32.gmra.mrb[0].mxu0 %v1370
      %v1372 = vpop.f32.mrb[0].mxu0
      %v1373 = vadd.f32 %v1196, %v1372
      %v1374 = vpop.f32.mrb[0].mxu0
      %1375 = vmatprep.mubr.f32.mxu0 0.0
      %v1376 = vand.u32 %v37, 4294901760
      %1377 = vmatmul.mubr.f32.gmra.mrb[0].mxu0 %v1376
      %v1378 = vpop.f32.mrb[0].mxu0
      %v1379 = vadd.f32 %v1202, %v1378
      %v1380 = vpop.f32.mrb[0].mxu0
      %1381 = vmatprep.mubr.f32.mxu0 0.0
      %v1382 = vand.u32 %v38, 4294901760
      %1383 = vmatmul.mubr.f32.gmra.mrb[0].mxu0 %v1382
      %v1384 = vpop.f32.mrb[0].mxu0
      %v1385 = vadd.f32 %v1208, %v1384
      %v1386 = vpop.f32.mrb[0].mxu0
      %1387 = vdwg.mxu0
      %1388 = vst [vmem:[#allocation5] sm:$0xff] %v1295
      %1389 = vst [vmem:[#allocation5 + $0x8] sm:$0xff] %v1301
      %1390 = vst [vmem:[#allocation5 + $0x10] sm:$0xff] %v1307
      %1391 = vst [vmem:[#allocation5 + $0x18] sm:$0xff] %v1313
      %1392 = vst [vmem:[#allocation5 + $0x20] sm:$0xff] %v1319
      %1393 = vst [vmem:[#allocation5 + $0x28] sm:$0xff] %v1325
      %1394 = vst [vmem:[#allocation5 + $0x30] sm:$0xff] %v1331
      %1395 = vst [vmem:[#allocation5 + $0x38] sm:$0xff] %v1337
      %1396 = vst [vmem:[#allocation5 + $0x40] sm:$0xff] %v1343
      %1397 = vst [vmem:[#allocation5 + $0x48] sm:$0xff] %v1349
      %1398 = vst [vmem:[#allocation5 + $0x50] sm:$0xff] %v1355
      %1399 = vst [vmem:[#allocation5 + $0x58] sm:$0xff] %v1361
      %1400 = vst [vmem:[#allocation5 + $0x60] sm:$0xff] %v1367
      %1401 = vst [vmem:[#allocation5 + $0x68] sm:$0xff] %v1373
      %1402 = vst [vmem:[#allocation5 + $0x70] sm:$0xff] %v1379
      %1403 = vst [vmem:[#allocation5 + $0x78] sm:$0xff] %v1385
    $region17: #{tpu_custom_call.1} parent=1 // pred_fallthru
      _
    // Predicated region
    $region18: #{tpu_custom_call.1} parent=1 // pred_check
      _
    $region19: #{tpu_custom_call.1} parent=1 // pred_check_branch
      %1405 = sbr.rel (0) target = $region21
    $region20: #{tpu_custom_call.1} parent=1 // pred_region
      %s1407 = ssub.s32 2048, 2048
      %1408 = vsyncadd [#allocation4], %s1407
      %s1409 = sshll.u32 [#allocation5], 4
      %s1410 = int_to_ptr.vmem [resolvable:$true] %s1409
      %1415 = dma.vmem_to_hbm [thread:$0]  %s1410, 2048, %s1, [#allocation4], 128, 128, 8
    $region21: #{tpu_custom_call.1} parent=1 // pred_fallthru
      _
    // Predicated region
    $region22: #{tpu_custom_call.1} parent=1 // pred_check
      _
    $region23: #{tpu_custom_call.1} parent=1 // pred_check_branch
      %1417 = sbr.rel (0) target = $region25
    $region24: #{tpu_custom_call.1} parent=1 // pred_region
      %1418 = dma.done [#allocation4], 2048
    $region25: #{tpu_custom_call.1} parent=1 // pred_fallthru
      _
    %1419 = vsyncpa [#allocation3], 1
    %1420 = vsyncpa [#allocation4], 1

</llo_original>
